<compile_context>
chip_gen: v7x
topology: tpu7x:2x2x1
jax: 0.10.0
libtpu: 0.0.40
codegen_flags: <defaults>
</compile_context>

<pallas_src>
import numpy as np
import jax
import jax.numpy as jnp
from jax.experimental import pallas as pl
from jax.experimental.pallas import tpu as pltpu


def up4_kernel(x_ref, w_ref, b_ref, o_ref):
    # x_ref: (1, 1, TH+2, Wp, F) bf16   halo'd row tile of the shift-stacked input
    # w_ref: (3, F, OC)          bf16   per-row-offset folded complex weights
    # b_ref: (1, OC)             f32    effective biases broadcast over (py, px)
    # o_ref: (1, 1, TH*Wp, OC)   f32
    TH = x_ref.shape[2] - 2
    Wp = x_ref.shape[3]
    F = x_ref.shape[4]
    OC = o_ref.shape[3]

    acc = jnp.zeros((TH * Wp, OC), jnp.float32)
    # Static 3-iteration row-offset loop: each iteration is one (TH*Wp, F) @ (F, OC) MXU
    # matmul (bf16 in, f32 accumulate).  Row slicing is along a leading (non-tiled) dim,
    # so no sublane/lane relayouts are generated.
    for r in range(3):
        xr = x_ref[0, 0, r:r + TH].reshape(TH * Wp, F)
        acc = acc + jnp.dot(xr, w_ref[r], preferred_element_type=jnp.float32)

    o_ref[0, 0] = jnp.maximum(acc + b_ref[...], 0.0)      # complex_relu on both parts


def _pick_row_tile(h):
    for th in (64, 32, 16, 8):
        if h % th == 0:
            return th
    return h


def _fold_weights(Wr, Wi):
    """Fold the 4x4 ConvTranspose taps + complex combination into 3 (F, OC) matrices.

    Parity decomposition bookkeeping: output row 2m+py uses kernel rows kh = 3+py-2r at
    padded input row m+r, with r = py + a, a in {0,1} (same along columns with s = px+b).
    """
    Cin, Cout = Wr.shape[0], Wr.shape[1]
    r = np.arange(3)[:, None]
    p = np.arange(2)[None, :]
    a = r - p
    valid = (a >= 0) & (a <= 1)                     # (3, 2)  [r/s, py/px]
    kidx = np.clip(3 + p - 2 * r, 0, 3)             # (3, 2)  kernel tap index

    kh = jnp.asarray(kidx)
    kw = jnp.asarray(kidx)
    # W*_k[ci, co, r, py, s, px] = W*[ci, co, kh[r,py], kw[s,px]]
    Wr_k = Wr[:, :, kh[:, :, None, None], kw[None, None, :, :]]
    Wi_k = Wi[:, :, kh[:, :, None, None], kw[None, None, :, :]]
    mask = jnp.asarray(valid[:, :, None, None] & valid[None, None, :, :], jnp.float32)

    # complex combination folded into the output dim (p_out):
    #   real_out: +Wr on x.real, -Wi on x.imag ; imag_out: +Wi on x.real, +Wr on x.imag
    comb = jnp.stack([
        jnp.stack([Wr_k, Wi_k], axis=-1),           # p_in = 0 (real input)
        jnp.stack([-Wi_k, Wr_k], axis=-1),          # p_in = 1 (imag input)
    ], axis=0)                                      # (p_in, ci, co, r, py, s, px, p_out)
    comb = comb * mask[None, None, None, :, :, :, :, None]
    # -> (r, p_in, s, ci, py, px, p_out, co)
    Wmat = jnp.transpose(comb, (3, 0, 5, 1, 4, 6, 7, 2))
    return Wmat.reshape(3, 2 * 3 * Cin, 2 * 2 * 2 * Cout)


def up4_forward(x, Wr, Wi, br, bi):
    """x: complex64 NCHW (N, Cin, H, W); Wr/Wi: (Cin, Cout, 4, 4); br/bi: (Cout,)."""
    N, Cin, H, W = x.shape
    Cout = Wr.shape[1]
    F = 2 * 3 * Cin
    OC = 2 * 2 * 2 * Cout

    xr = jnp.real(x).astype(jnp.float32).transpose(0, 2, 3, 1)   # NHWC
    xi = jnp.imag(x).astype(jnp.float32).transpose(0, 2, 3, 1)

    # 1-pixel halo pad, stack the 3 column shifts and both complex parts along the
    # feature (lane) axis -> (N, H+2, W, F).  All column shifts happen here (XLA-fused),
    # never inside the kernel.
    def shift_stack(a):
        ap = jnp.pad(a, ((0, 0), (1, 1), (1, 1), (0, 0)))
        return jnp.stack([ap[:, :, s:s + W] for s in range(3)], axis=3)   # (N,H+2,W,3,Cin)

    xcat = jnp.stack([shift_stack(xr), shift_stack(xi)], axis=3)          # (N,H+2,W,2,3,Cin)
    xcat = xcat.reshape(N, H + 2, W, F)

    # pad W to a sublane multiple so the in-kernel (TH,W,F)->(TH*W,F) merge is layout-free
    Wp = -(-W // 8) * 8
    if Wp != W:
        xcat = jnp.pad(xcat, ((0, 0), (0, 0), (0, Wp - W), (0, 0)))
    xcat = xcat.astype(jnp.bfloat16)

    # overlapping row tiles (2-row halo) so the grid tiles H without in-kernel gathers
    TH = _pick_row_tile(H)
    nT = H // TH
    xt = jnp.stack([xcat[:, t * TH:t * TH + TH + 2] for t in range(nT)], axis=1)
    # xt: (N, nT, TH+2, Wp, F)

    Wmat = _fold_weights(Wr.astype(jnp.float32), Wi.astype(jnp.float32)).astype(jnp.bfloat16)
    b_eff = jnp.stack([br - bi, br + bi], axis=0).astype(jnp.float32)     # (p_out, Cout)
    b_oc = jnp.broadcast_to(b_eff[None, None], (2, 2, 2, Cout)).reshape(1, OC)

    flops = 2 * N * nT * 3 * TH * Wp * F * OC
    bytes_accessed = int(xt.size * 2 + Wmat.size * 2 + b_oc.size * 4
                         + N * nT * TH * Wp * OC * 4)

    out = pl.pallas_call(
        up4_kernel,
        grid=(N, nT),
        in_specs=[
            pl.BlockSpec((1, 1, TH + 2, Wp, F), lambda n, t: (n, t, 0, 0, 0)),
            pl.BlockSpec((3, F, OC), lambda n, t: (0, 0, 0)),
            pl.BlockSpec((1, OC), lambda n, t: (0, 0)),
        ],
        out_specs=pl.BlockSpec((1, 1, TH * Wp, OC), lambda n, t: (n, t, 0, 0)),
        out_shape=jax.ShapeDtypeStruct((N, nT, TH * Wp, OC), jnp.float32),
        compiler_params=pltpu.CompilerParams(
            dimension_semantics=("parallel", "parallel")),
        cost_estimate=pl.CostEstimate(
            flops=flops, transcendentals=0, bytes_accessed=bytes_accessed),
    )(xt, Wmat, b_oc)

    # de-interleave the (py, px, part, co) slab back to complex NCHW (layout plumbing)
    y = out.reshape(N, nT, TH, Wp, 2, 2, 2, Cout)
    y = y.reshape(N, H, Wp, 2, 2, 2, Cout)[:, :, :W]      # (n, m, w, py, px, p_out, co)
    y = jnp.transpose(y, (0, 5, 6, 1, 3, 2, 4))           # (n, p_out, co, m, py, w, px)
    y = y.reshape(N, 2, Cout, 2 * H, 2 * W)
    return y[:, 0] + 1j * y[:, 1]


# ---------------- numpy reference (exact PyTorch ConvTranspose2d semantics) ----------------
def convT_np(x, Wt, b, stride=2, pad=1):
    N, Cin, H, Wd = x.shape
    Cout, Kh, Kw = Wt.shape[1], Wt.shape[2], Wt.shape[3]
    Hout = (H - 1) * stride - 2 * pad + Kh
    Wout = (Wd - 1) * stride - 2 * pad + Kw
    out = np.zeros((N, Cout, Hout, Wout), np.float32)
    for n in range(N):
        for ci in range(Cin):
            for i in range(H):
                for j in range(Wd):
                    v = x[n, ci, i, j]
                    for kh in range(Kh):
                        y = i * stride - pad + kh
                        if y < 0 or y >= Hout:
                            continue
                        for kw in range(Kw):
                            xx = j * stride - pad + kw
                            if xx < 0 or xx >= Wout:
                                continue
                            out[n, :, y, xx] += v * Wt[ci, :, kh, kw]
    return out + b[None, :, None, None]


if __name__ == "__main__":
    key = jax.random.PRNGKey(0)
    N, Cin, Cout, H, W, K = 2, 8, 4, 8, 8, 4
    k1, k2, k3, k4, k5, k6 = jax.random.split(key, 6)

    xr0 = jax.random.normal(k1, (N, Cin, H, W), jnp.float32)
    xi0 = jax.random.normal(k2, (N, Cin, H, W), jnp.float32)
    x = (xr0 + 1j * xi0).astype(jnp.complex64)

    # deterministic synthetic parameters (ConvTranspose2d weight layout: (Cin, Cout, K, K))
    Wr = 0.1 * jax.random.normal(k3, (Cin, Cout, K, K), jnp.float32)
    Wi = 0.1 * jax.random.normal(k4, (Cin, Cout, K, K), jnp.float32)
    br = 0.1 * jax.random.normal(k5, (Cout,), jnp.float32)
    bi = 0.1 * jax.random.normal(k6, (Cout,), jnp.float32)

    out = jax.block_until_ready(up4_forward(x, Wr, Wi, br, bi))

    # reference
    xr_np, xi_np = np.asarray(xr0), np.asarray(xi0)
    Wr_np, Wi_np = np.asarray(Wr), np.asarray(Wi)
    br_np, bi_np = np.asarray(br), np.asarray(bi)
    fr_real = convT_np(xr_np, Wr_np, br_np)
    fi_imag = convT_np(xi_np, Wi_np, bi_np)
    fr_imag = convT_np(xi_np, Wr_np, br_np)
    fi_real = convT_np(xr_np, Wi_np, bi_np)
    ref_r = np.maximum(fr_real - fi_imag, 0.0)
    ref_i = np.maximum(fr_imag + fi_real, 0.0)

    got_r = np.asarray(jnp.real(out))
    got_i = np.asarray(jnp.imag(out))
    assert got_r.shape == (N, Cout, 2 * H, 2 * W)
    # bf16 matmul operands -> loosened tolerance vs the f32 reference
    np.testing.assert_allclose(got_r, ref_r, rtol=5e-2, atol=5e-2)
    np.testing.assert_allclose(got_i, ref_i, rtol=5e-2, atol=5e-2)
    print("KERNEL_OK")
</pallas_src>

<mosaic_0001>
module attributes {stable_mosaic.version = 11 : i64} {
  func.func @up4_kernel(%arg0: i32, %arg1: i32, %arg2: memref<1x1x10x8x48xbf16, #tpu.memory_space<vmem>>, %arg3: memref<3x48x32xbf16, #tpu.memory_space<vmem>>, %arg4: memref<1x32xf32, #tpu.memory_space<vmem>>, %arg5: memref<1x1x64x32xf32, #tpu.memory_space<vmem>>) attributes {dimension_semantics = [#tpu.dimension_semantics<parallel>, #tpu.dimension_semantics<parallel>], iteration_bounds = array<i64: 2, 1>, scalar_prefetch = 0 : i64, scratch_operands = 0 : i64, tpu.core_type = #tpu.core_type<tc>, window_params = [{transform_indices = @transform_0, window_bounds = array<i64: 1, 1, 10, 8, 48>}, {pipeline_mode = #tpu.pipeline_mode<synchronous>, transform_indices = @transform_1, window_bounds = array<i64: 3, 48, 32>}, {pipeline_mode = #tpu.pipeline_mode<synchronous>, transform_indices = @transform_2, window_bounds = array<i64: 1, 32>}, {transform_indices = @transform_3, window_bounds = array<i64: 1, 1, 64, 32>}]} {
    %cst = arith.constant 0.000000e+00 : f32
    %0 = vector.broadcast %cst : f32 to vector<64x32xf32>
    %c0 = arith.constant 0 : index
    %c0_0 = arith.constant 0 : index
    %c0_1 = arith.constant 0 : index
    %c0_2 = arith.constant 0 : index
    %c0_3 = arith.constant 0 : index
    %1 = vector.load %arg2[%c0, %c0_0, %c0_1, %c0_2, %c0_3] : memref<1x1x10x8x48xbf16, #tpu.memory_space<vmem>>, vector<1x1x8x8x48xbf16>
    %2 = vector.shape_cast %1 : vector<1x1x8x8x48xbf16> to vector<8x8x48xbf16>
    %3 = vector.shape_cast %2 : vector<8x8x48xbf16> to vector<64x48xbf16>
    %c0_4 = arith.constant 0 : index
    %c0_5 = arith.constant 0 : index
    %c0_6 = arith.constant 0 : index
    %4 = vector.load %arg3[%c0_4, %c0_5, %c0_6] : memref<3x48x32xbf16, #tpu.memory_space<vmem>>, vector<1x48x32xbf16>
    %5 = vector.shape_cast %4 : vector<1x48x32xbf16> to vector<48x32xbf16>
    %cst_7 = arith.constant dense<0.000000e+00> : vector<64x32xf32>
    %6 = tpu.matmul %3, %5, %cst_7 {dimension_numbers = #tpu.dot_dimension_numbers<[1], [0], [0], [1], [0, 0, 1, 1], [], []>} : vector<64x48xbf16>, vector<48x32xbf16>, vector<64x32xf32> -> vector<64x32xf32>
    %7 = arith.addf %0, %6 : vector<64x32xf32>
    %c0_8 = arith.constant 0 : index
    %c0_9 = arith.constant 0 : index
    %c1 = arith.constant 1 : index
    %c0_10 = arith.constant 0 : index
    %c0_11 = arith.constant 0 : index
    %8 = vector.load %arg2[%c0_8, %c0_9, %c1, %c0_10, %c0_11] : memref<1x1x10x8x48xbf16, #tpu.memory_space<vmem>>, vector<1x1x8x8x48xbf16>
    %9 = vector.shape_cast %8 : vector<1x1x8x8x48xbf16> to vector<8x8x48xbf16>
    %10 = vector.shape_cast %9 : vector<8x8x48xbf16> to vector<64x48xbf16>
    %c1_12 = arith.constant 1 : index
    %c0_13 = arith.constant 0 : index
    %c0_14 = arith.constant 0 : index
    %11 = vector.load %arg3[%c1_12, %c0_13, %c0_14] : memref<3x48x32xbf16, #tpu.memory_space<vmem>>, vector<1x48x32xbf16>
    %12 = vector.shape_cast %11 : vector<1x48x32xbf16> to vector<48x32xbf16>
    %cst_15 = arith.constant dense<0.000000e+00> : vector<64x32xf32>
    %13 = tpu.matmul %10, %12, %cst_15 {dimension_numbers = #tpu.dot_dimension_numbers<[1], [0], [0], [1], [0, 0, 1, 1], [], []>} : vector<64x48xbf16>, vector<48x32xbf16>, vector<64x32xf32> -> vector<64x32xf32>
    %14 = arith.addf %7, %13 : vector<64x32xf32>
    %c0_16 = arith.constant 0 : index
    %c0_17 = arith.constant 0 : index
    %c2 = arith.constant 2 : index
    %c0_18 = arith.constant 0 : index
    %c0_19 = arith.constant 0 : index
    %15 = vector.load %arg2[%c0_16, %c0_17, %c2, %c0_18, %c0_19] : memref<1x1x10x8x48xbf16, #tpu.memory_space<vmem>>, vector<1x1x8x8x48xbf16>
    %16 = vector.shape_cast %15 : vector<1x1x8x8x48xbf16> to vector<8x8x48xbf16>
    %17 = vector.shape_cast %16 : vector<8x8x48xbf16> to vector<64x48xbf16>
    %c2_20 = arith.constant 2 : index
    %c0_21 = arith.constant 0 : index
    %c0_22 = arith.constant 0 : index
    %18 = vector.load %arg3[%c2_20, %c0_21, %c0_22] : memref<3x48x32xbf16, #tpu.memory_space<vmem>>, vector<1x48x32xbf16>
    %19 = vector.shape_cast %18 : vector<1x48x32xbf16> to vector<48x32xbf16>
    %cst_23 = arith.constant dense<0.000000e+00> : vector<64x32xf32>
    %20 = tpu.matmul %17, %19, %cst_23 {dimension_numbers = #tpu.dot_dimension_numbers<[1], [0], [0], [1], [0, 0, 1, 1], [], []>} : vector<64x48xbf16>, vector<48x32xbf16>, vector<64x32xf32> -> vector<64x32xf32>
    %21 = arith.addf %14, %20 : vector<64x32xf32>
    %c0_24 = arith.constant 0 : index
    %c0_25 = arith.constant 0 : index
    %22 = vector.load %arg4[%c0_24, %c0_25] : memref<1x32xf32, #tpu.memory_space<vmem>>, vector<1x32xf32>
    %23 = vector.broadcast %22 : vector<1x32xf32> to vector<64x32xf32>
    %24 = arith.addf %21, %23 : vector<64x32xf32>
    %cst_26 = arith.constant 0.000000e+00 : f32
    %25 = vector.broadcast %cst_26 : f32 to vector<64x32xf32>
    %26 = arith.maximumf %24, %25 : vector<64x32xf32>
    %c0_27 = arith.constant 0 : index
    %c0_28 = arith.constant 0 : index
    %c0_29 = arith.constant 0 : index
    %c0_30 = arith.constant 0 : index
    %27 = vector.load %arg5[%c0_27, %c0_28, %c0_29, %c0_30] : memref<1x1x64x32xf32, #tpu.memory_space<vmem>>, vector<1x1x64x32xf32>
    %28 = vector.shape_cast %27 : vector<1x1x64x32xf32> to vector<64x32xf32>
    %29 = vector.shape_cast %26 : vector<64x32xf32> to vector<1x1x64x32xf32>
    tpu.vector_store %arg5[%c0_27, %c0_28, %c0_29, %c0_30], %29 {strides = array<i32>} : memref<1x1x64x32xf32, #tpu.memory_space<vmem>>, vector<1x1x64x32xf32>,
    return
  }
  func.func @transform_0(%arg0: i32, %arg1: i32) -> (i32, i32, i32, i32, i32) {
    %c0_i32 = arith.constant 0 : i32
    %c0_i32_0 = arith.constant 0 : i32
    %c0_i32_1 = arith.constant 0 : i32
    %c0_i32_2 = arith.constant 0 : i32
    return %arg0, %arg1, %c0_i32, %c0_i32_0, %c0_i32_1 : i32, i32, i32, i32, i32
  }
  func.func @transform_1(%arg0: i32, %arg1: i32) -> (i32, i32, i32) {
    %c0_i32 = arith.constant 0 : i32
    %c0_i32_0 = arith.constant 0 : i32
    %c0_i32_1 = arith.constant 0 : i32
    %c0_i32_2 = arith.constant 0 : i32
    return %c0_i32, %c0_i32_0, %c0_i32_1 : i32, i32, i32
  }
  func.func @transform_2(%arg0: i32, %arg1: i32) -> (i32, i32) {
    %c0_i32 = arith.constant 0 : i32
    %c0_i32_0 = arith.constant 0 : i32
    %c0_i32_1 = arith.constant 0 : i32
    return %c0_i32, %c0_i32_0 : i32, i32
  }
  func.func @transform_3(%arg0: i32, %arg1: i32) -> (i32, i32, i32, i32) {
    %c0_i32 = arith.constant 0 : i32
    %c0_i32_0 = arith.constant 0 : i32
    %c0_i32_1 = arith.constant 0 : i32
    return %arg0, %arg1, %c0_i32, %c0_i32_0 : i32, i32, i32, i32
  }
}

</mosaic_0001>

<llo_original>
// kernel: tpu_custom_call.1
$region0: #{tpu_custom_call.1}
  #allocation0 [shape = 'u32[]', space=smem, size = 0x4, offset = 0x4, fixed_abs, tag = 'smem constant byte address 0x4 - core index']
  #allocation1 [shape = 'u32[144,128]{1,0:T(1,128)}', space=vmem, size = 0x12000, scoped, tag = 'internal scratch']
  %s0 = inlined_call_operand.vmem [shape: bf16[2,1,10,8,48], index: 0, kind: input, shape index: {}]
  %s1 = inlined_call_operand.vmem [shape: bf16[3,48,32], index: 1, kind: input, shape index: {}]
  %s2 = inlined_call_operand.vmem [shape: f32[1,32], index: 2, kind: input, shape index: {}]
  %s3 = inlined_call_operand.vmem [shape: f32[2,1,64,32], index: 3, kind: output, shape index: {}]
  %s4 = sld [smem:[#allocation0]]
  $region45: #{tpu_custom_call.1} parent=0
    _
  %s6 = ssub.s32 1, %s4
  %s7 = scalar_select 0, %s6, %s4
  loop: start=0, step=1, limit=4
  $region2: #{tpu_custom_call.1} parent=0 // loop_pre_header
    _
  $region3: #{tpu_custom_call.1} parent=0 // loop_header
    %s9 = sphi 0, %s13
    %p10 = scmp.ge.s32.totalorder %s9, 4
    %s16 = sphi 0, %s28
    %s17 = sphi 0, %s24
    %s18 = sphi 0, %s16
    %s19 = sphi 0, %s17
    %s20 = sphi 0, %s18
    %s21 = sphi 0, %s19
    %s33 = sphi 0, %s35
    %s36 = sphi 0, %s33
    %s37 = sphi 0, %s36
    %s53 = sphi 0, %s37
    %s57 = sphi 0, %s57
    %s59 = sphi 0, %s57
    %s60 = sphi 0, %s59
    %s74 = sphi 0, %s60
    %s78 = sphi 0, %s78
    %s80 = sphi 0, %s78
    %s81 = sphi 0, %s80
    %s95 = sphi 0, %s81
    %s103 = sphi 0, %s105
    %s106 = sphi 0, %s103
    %s107 = sphi 0, %s106
    %s123 = sphi 0, %s107
  $region4: #{tpu_custom_call.1} parent=0 // loop_header_branch
    %12 = sbr.rel (%p10) target = $region8
  $region5: #{tpu_custom_call.1} parent=0 // loop_body
    %s14 = ssub.s32 %s9, 1
    %s15 = ssub.s32 %s9, 2
    %s22 = sadd.s32 1, %s17
    %p23 = scmp.ge.s32.totalorder %s22, 1
    %s24 = scalar_select %p23, 0, %s22
    %s25 = sadd.s32 1, %s16
    %s26 = scalar_select %p23, %s25, %s16
    %p27 = scmp.ge.s32.totalorder %s26, 2
    %s28 = scalar_select %p27, 0, %s26
    %s29 = ssub.s32 %s16, %s28
    %s30 = ssub.s32 %s17, %s24
    %s31 = sor.u32 %s29, %s30
    %p32 = scmp.eq.s32.totalorder %s31, 0
    %s34 = sadd.s32 %s33, 1
    %s35 = scalar_select %p32, %s33, %s34
    %p38 = pneg %p32
    %p39 = scmp.eq.s32.totalorder %s9, 1
    %p40 = por %p38, %p39
    %p41 = scmp.ne.s32.totalorder %s33, %s36
    %p42 = scmp.eq.s32.totalorder %s9, 0
    %p43 = por %p41, %p42
    %p44 = scmp.ne.s32.totalorder %s33, %s36
    %p45 = scmp.eq.s32.totalorder %s14, 1
    %p46 = por %p44, %p45
    %p47 = scmp.ne.s32.totalorder %s36, %s37
    %p48 = scmp.eq.s32.totalorder %s14, 0
    %p49 = por %p47, %p48
    %p50 = scmp.ne.s32.totalorder %s36, %s37
    %p51 = scmp.eq.s32.totalorder %s15, 1
    %p52 = por %p50, %p51
    %p54 = scmp.ne.s32.totalorder %s37, %s53
    %p55 = scmp.eq.s32.totalorder %s15, 0
    %p56 = por %p54, %p55
    %s58 = sadd.s32 %s57, 1
    %p61 = scmp.eq.s32.totalorder %s9, 1
    %p62 = scmp.ne.s32.totalorder %s57, %s59
    %p63 = scmp.eq.s32.totalorder %s9, 0
    %p64 = por %p62, %p63
    %p65 = scmp.ne.s32.totalorder %s57, %s59
    %p66 = scmp.eq.s32.totalorder %s14, 1
    %p67 = por %p65, %p66
    %p68 = scmp.ne.s32.totalorder %s59, %s60
    %p69 = scmp.eq.s32.totalorder %s14, 0
    %p70 = por %p68, %p69
    %p71 = scmp.ne.s32.totalorder %s59, %s60
    %p72 = scmp.eq.s32.totalorder %s15, 1
    %p73 = por %p71, %p72
    %p75 = scmp.ne.s32.totalorder %s60, %s74
    %p76 = scmp.eq.s32.totalorder %s15, 0
    %p77 = por %p75, %p76
    %s79 = sadd.s32 %s78, 1
    %p82 = scmp.eq.s32.totalorder %s9, 1
    %p83 = scmp.ne.s32.totalorder %s78, %s80
    %p84 = scmp.eq.s32.totalorder %s9, 0
    %p85 = por %p83, %p84
    %p86 = scmp.ne.s32.totalorder %s78, %s80
    %p87 = scmp.eq.s32.totalorder %s14, 1
    %p88 = por %p86, %p87
    %p89 = scmp.ne.s32.totalorder %s80, %s81
    %p90 = scmp.eq.s32.totalorder %s14, 0
    %p91 = por %p89, %p90
    %p92 = scmp.ne.s32.totalorder %s80, %s81
    %p93 = scmp.eq.s32.totalorder %s15, 1
    %p94 = por %p92, %p93
    %p96 = scmp.ne.s32.totalorder %s81, %s95
    %p97 = scmp.eq.s32.totalorder %s15, 0
    %p98 = por %p96, %p97
    %s99 = ssub.s32 %s16, %s28
    %s100 = ssub.s32 %s17, %s24
    %s101 = sor.u32 %s99, %s100
    %p102 = scmp.eq.s32.totalorder %s101, 0
    %s104 = sadd.s32 %s103, 1
    %s105 = scalar_select %p102, %s103, %s104
    %p108 = pneg %p102
    %p109 = scmp.eq.s32.totalorder %s9, 1
    %p110 = por %p108, %p109
    %p111 = scmp.ne.s32.totalorder %s103, %s106
    %p112 = scmp.eq.s32.totalorder %s9, 0
    %p113 = por %p111, %p112
    %p114 = scmp.ne.s32.totalorder %s103, %s106
    %p115 = scmp.eq.s32.totalorder %s14, 1
    %p116 = por %p114, %p115
    %p117 = scmp.ne.s32.totalorder %s106, %s107
    %p118 = scmp.eq.s32.totalorder %s14, 0
    %p119 = por %p117, %p118
    %p120 = scmp.ne.s32.totalorder %s106, %s107
    %p121 = scmp.eq.s32.totalorder %s15, 1
    %p122 = por %p120, %p121
    %p124 = scmp.ne.s32.totalorder %s107, %s123
    %p125 = scmp.eq.s32.totalorder %s15, 0
    %p126 = por %p124, %p125
    %p127 = scmp.le.s32.totalorder 1, %s9
    %p128 = scmp.lt.s32.totalorder %s9, 3
    %p129 = pnand %p127, %p128
    %p130 = pneg %p129
    // Predicated region
    $region9: #{tpu_custom_call.1} parent=5 // pred_check
      _
    $region10: #{tpu_custom_call.1} parent=5 // pred_check_branch
      %132 = sbr.rel (%p129) target = $region12
    $region11: #{tpu_custom_call.1} parent=5 // pred_region
      %s133 = ssub.s32 %s9, 1
      // Predicated region
      $region13: #{tpu_custom_call.1} parent=11 // pred_check
        %p134 = pneg %p70
      $region14: #{tpu_custom_call.1} parent=11 // pred_check_branch
        %136 = sbr.rel (%p134) target = $region16
      $region15: #{tpu_custom_call.1} parent=11 // pred_region
        _
      $region16: #{tpu_custom_call.1} parent=11 // pred_fallthru
        _
      // Predicated region
      $region17: #{tpu_custom_call.1} parent=11 // pred_check
        %p137 = pneg %p91
      $region18: #{tpu_custom_call.1} parent=11 // pred_check_branch
        %139 = sbr.rel (%p137) target = $region20
      $region19: #{tpu_custom_call.1} parent=11 // pred_region
        _
      $region20: #{tpu_custom_call.1} parent=11 // pred_fallthru
        _
    $region12: #{tpu_custom_call.1} parent=5 // pred_fallthru
      _
    %p140 = scmp.lt.s32.totalorder %s9, 2
    // Predicated region
    $region21: #{tpu_custom_call.1} parent=5 // pred_check
      %p141 = pneg %p140
    $region22: #{tpu_custom_call.1} parent=5 // pred_check_branch
      %143 = sbr.rel (%p141) target = $region24
    $region23: #{tpu_custom_call.1} parent=5 // pred_region
      // Predicated region
      $region25: #{tpu_custom_call.1} parent=23 // pred_check
        %p144 = pneg %p43
      $region26: #{tpu_custom_call.1} parent=23 // pred_check_branch
        %146 = sbr.rel (%p144) target = $region28
      $region27: #{tpu_custom_call.1} parent=23 // pred_region
        %p147 = scmp.lt.s32.totalorder %s16, 1
        %s148 = scalar_select %p147, %s16, 1
        %p149 = scmp.lt.s32.totalorder %s17, 0
        %s150 = scalar_select %p149, %s17, 0
        %s151 = smul.addr %s150, 10
        %s152 = smul.addr %s148, 10
        %s153 = sadd.s32 %s151, %s152
        %s154 = smul.addr %s153, 4
        %s155 = scalar_lea.vmem %s0, %s154
      $region28: #{tpu_custom_call.1} parent=23 // pred_fallthru
        _
    $region24: #{tpu_custom_call.1} parent=5 // pred_fallthru
      _
    %p156 = scmp.le.s32.totalorder 1, %s9
    %p157 = scmp.lt.s32.totalorder %s9, 3
    %p158 = pnand %p156, %p157
    %p159 = pneg %p158
    // Predicated region
    $region29: #{tpu_custom_call.1} parent=5 // pred_check
      _
    $region30: #{tpu_custom_call.1} parent=5 // pred_check_branch
      %161 = sbr.rel (%p158) target = $region32
    $region31: #{tpu_custom_call.1} parent=5 // pred_region
      %s162 = ssub.s32 %s9, 1
      %p163 = scmp.lt.s32.totalorder %s18, 1
      %s164 = scalar_select %p163, %s18, 1
      %p165 = scmp.lt.s32.totalorder %s19, 0
      %s166 = scalar_select %p165, %s19, 0
      %s167 = smul.addr %s166, 10
      %s168 = smul.addr %s164, 10
      %s169 = sadd.s32 %s167, %s168
      %s170 = smul.addr %s169, 4
      %s171 = scalar_lea.vmem %s0, %s170
      %p172 = pneg %p49
      %p173 = pneg %p46
      %p174 = pneg %p70
      %p175 = pneg %p67
      %p176 = pneg %p91
      %p177 = pneg %p88
      %p178 = pneg %p119
      %p179 = pneg %p116
      %p180 = scmp.lt.s32.totalorder %s18, 1
      %s181 = scalar_select %p180, %s18, 1
      %p182 = scmp.lt.s32.totalorder %s19, 0
      %s183 = scalar_select %p182, %s19, 0
      %s184 = smul.addr %s183, 8
      %s185 = smul.addr %s181, 8
      %s186 = sadd.s32 %s184, %s185
      %s187 = smul.addr %s186, 8
      %s188 = scalar_lea.vmem %s3, %s187
      %p189 = scmp.lt.s32.totalorder %s18, 1
      %s190 = scalar_select %p189, %s18, 1
      %p191 = scmp.lt.s32.totalorder %s19, 0
      %s192 = scalar_select %p191, %s19, 0
      %s193 = smul.addr %s192, 10
      %s194 = smul.addr %s190, 10
      %s195 = sadd.s32 %s193, %s194
      %s196 = smul.addr %s195, 4
      %s197 = scalar_lea.vmem %s0, %s196
      %p198 = scmp.lt.s32.totalorder %s18, 1
      %s199 = scalar_select %p198, %s18, 1
      %p200 = scmp.lt.s32.totalorder %s19, 0
      %s201 = scalar_select %p200, %s19, 0
      %s202 = smul.addr %s201, 8
      %s203 = smul.addr %s199, 8
      %s204 = sadd.s32 %s202, %s203
      %s205 = smul.addr %s204, 8
      %s206 = scalar_lea.vmem %s3, %s205
      %v208 = vld [vmem:[%s197] sm:$0xf]
      %v209 = vld [vmem:[%s197 + $0x4] sm:$0xf]
      %v210 = vld [vmem:[%s197 + $0x8] sm:$0xf]
      %v211 = vld [vmem:[%s197 + $0xc] sm:$0xf]
      %v212 = vld [vmem:[%s197 + $0x10] sm:$0xf]
      %v213 = vld [vmem:[%s197 + $0x14] sm:$0xf]
      %v214 = vld [vmem:[%s197 + $0x18] sm:$0xf]
      %v215 = vld [vmem:[%s197 + $0x1c] sm:$0xf]
      %v216 = vld [vmem:[%s1] sm:$0xf]
      %v217 = vld [vmem:[%s1 + $0x4] sm:$0xf]
      %v218 = vld [vmem:[%s1 + $0x8] sm:$0xf]
      %v219 = vld [vmem:[%s1 + $0xc] sm:$0xf]
      %v220 = vld [vmem:[%s1 + $0x10] sm:$0xf]
      %v221 = vld [vmem:[%s1 + $0x14] sm:$0xf]
      %s222 = scalar_lea.vmem %s197, 4
      %v223 = vld [vmem:[%s222] sm:$0xf]
      %v224 = vld [vmem:[%s222 + $0x4] sm:$0xf]
      %v225 = vld [vmem:[%s222 + $0x8] sm:$0xf]
      %v226 = vld [vmem:[%s222 + $0xc] sm:$0xf]
      %v227 = vld [vmem:[%s222 + $0x10] sm:$0xf]
      %v228 = vld [vmem:[%s222 + $0x14] sm:$0xf]
      %v229 = vld [vmem:[%s222 + $0x18] sm:$0xf]
      %v230 = vld [vmem:[%s222 + $0x1c] sm:$0xf]
      %s231 = scalar_lea.vmem %s1, 24
      %v232 = vld [vmem:[%s231] sm:$0xf]
      %v233 = vld [vmem:[%s231 + $0x4] sm:$0xf]
      %v234 = vld [vmem:[%s231 + $0x8] sm:$0xf]
      %v235 = vld [vmem:[%s231 + $0xc] sm:$0xf]
      %v236 = vld [vmem:[%s231 + $0x10] sm:$0xf]
      %v237 = vld [vmem:[%s231 + $0x14] sm:$0xf]
      %v246 = vunpack.c.l.b16 %v223
      %v247 = vunpack.c.l.b16 %v224
      %v248 = vunpack.c.l.b16 %v225
      %v249 = vunpack.c.l.b16 %v226
      %v250 = vunpack.c.l.b16 %v227
      %v251 = vunpack.c.l.b16 %v228
      %v252 = vunpack.c.l.b16 %v229
      %v253 = vunpack.c.l.b16 %v230
      %v254 = vpack.c.b16 %v247, %v246
      %v255 = vpack.c.b16 %v249, %v248
      %v256 = vpack.c.b16 %v251, %v250
      %v257 = vpack.c.b16 %v253, %v252
      %v264 = vunpack.c.l.b16 %v232
      %v265 = vunpack.c.l.b16 %v233
      %v266 = vunpack.c.l.b16 %v234
      %v267 = vunpack.c.l.b16 %v235
      %v268 = vunpack.c.l.b16 %v236
      %v269 = vunpack.c.l.b16 %v237
      %v270 = vpack.c.b16 %v265, %v264
      %v271 = vpack.c.b16 %v267, %v266
      %v272 = vpack.c.b16 %v269, %v268
      %vm276 = vcmask 392192
      %v278 = vsel %vm276, %v254, 0
      %v281 = vsel %vm276, %v255, 0
      %v284 = vsel %vm276, %v256, 0
      %v287 = vsel %vm276, %v257, 0
      %289 = vmatprep.subr.bf16.mxu0 0
      %290 = vmatpush1.bf16.msra.mxu0 %v270
      %291 = vmatprep.subr.bf16.mxu0 0
      %292 = vmatpush1.bf16.msra.mxu0 %v271
      %293 = vmatprep.subr.bf16.mxu0 0
      %294 = vmatpush1.bf16.msra.mxu0 %v272
      %295 = vmatprep.subr.bf16.mxu0 0
      %296 = vmatpush1.bf16.msra.mxu0 0
      %297 = vmatprep.subr.bf16.mxu0 0
      %298 = vmatpush1.bf16.msra.mxu0 0
      %299 = vmatprep.subr.bf16.mxu0 0
      %300 = vmatpush1.bf16.msra.mxu0 0
      %301 = vmatprep.subr.bf16.mxu0 0
      %302 = vmatpush1.bf16.msra.mxu0 0
      %303 = vmatprep.subr.bf16.mxu0 0
      %304 = vmatpush1.bf16.msra.mxu0 0
      %305 = vmatprep.subr.bf16.mxu0 0
      %306 = vmatpush1.bf16.msra.mxu0 0
      %307 = vmatprep.subr.bf16.mxu0 0
      %308 = vmatpush1.bf16.msra.mxu0 0
      %309 = vmatprep.subr.bf16.mxu0 0
      %310 = vmatpush1.bf16.msra.mxu0 0
      %311 = vmatprep.subr.bf16.mxu0 0
      %312 = vmatpush1.bf16.msra.mxu0 0
      %313 = vmatprep.subr.bf16.mxu0 0
      %314 = vmatpush1.bf16.msra.mxu0 0
      %315 = vmatprep.subr.bf16.mxu0 0
      %316 = vmatpush1.bf16.msra.mxu0 0
      %317 = vmatprep.subr.bf16.mxu0 0
      %318 = vmatpush1.bf16.msra.mxu0 0
      %319 = vmatprep.subr.bf16.mxu0 0
      %320 = vmatpush1.bf16.msra.mxu0 0
      %321 = vmatprep.mubr.bf16.mxu0 0
      %322 = vmatmul.mubr.bf16.gmra.mrb[0].mxu0 %v278
      %v323 = vpop.f32.mrb[0].mxu0
      %v324 = vadd.f32 0.0, %v323
      %v325 = vpop.f32.mrb[0].mxu0
      %v326 = vpop.f32.mrb[0].mxu0
      %v327 = vadd.f32 0.0, %v326
      %v328 = vpop.f32.mrb[0].mxu0
      %329 = vmatprep.mubr.bf16.mxu0 0
      %330 = vmatmul.mubr.bf16.gmra.mrb[0].mxu0 %v281
      %v331 = vpop.f32.mrb[0].mxu0
      %v332 = vadd.f32 0.0, %v331
      %v333 = vpop.f32.mrb[0].mxu0
      %v334 = vpop.f32.mrb[0].mxu0
      %v335 = vadd.f32 0.0, %v334
      %v336 = vpop.f32.mrb[0].mxu0
      %337 = vmatprep.mubr.bf16.mxu0 0
      %338 = vmatmul.mubr.bf16.gmra.mrb[0].mxu0 %v284
      %v339 = vpop.f32.mrb[0].mxu0
      %v340 = vadd.f32 0.0, %v339
      %v341 = vpop.f32.mrb[0].mxu0
      %v342 = vpop.f32.mrb[0].mxu0
      %v343 = vadd.f32 0.0, %v342
      %v344 = vpop.f32.mrb[0].mxu0
      %345 = vmatprep.mubr.bf16.mxu0 0
      %346 = vmatmul.mubr.bf16.gmra.mrb[0].mxu0 %v287
      %v347 = vpop.f32.mrb[0].mxu0
      %v348 = vadd.f32 0.0, %v347
      %v349 = vpop.f32.mrb[0].mxu0
      %v350 = vpop.f32.mrb[0].mxu0
      %v351 = vadd.f32 0.0, %v350
      %v352 = vpop.f32.mrb[0].mxu0
      %353 = vdwg.mxu0
      %v362 = vunpack.c.l.b16 %v208
      %v363 = vunpack.c.l.b16 %v209
      %v364 = vunpack.c.l.b16 %v210
      %v365 = vunpack.c.l.b16 %v211
      %v366 = vunpack.c.l.b16 %v212
      %v367 = vunpack.c.l.b16 %v213
      %v368 = vunpack.c.l.b16 %v214
      %v369 = vunpack.c.l.b16 %v215
      %v370 = vpack.c.b16 %v363, %v362
      %v371 = vpack.c.b16 %v365, %v364
      %v372 = vpack.c.b16 %v367, %v366
      %v373 = vpack.c.b16 %v369, %v368
      %v380 = vunpack.c.l.b16 %v216
      %v381 = vunpack.c.l.b16 %v217
      %v382 = vunpack.c.l.b16 %v218
      %v383 = vunpack.c.l.b16 %v219
      %v384 = vunpack.c.l.b16 %v220
      %v385 = vunpack.c.l.b16 %v221
      %v386 = vpack.c.b16 %v381, %v380
      %v387 = vpack.c.b16 %v383, %v382
      %v388 = vpack.c.b16 %v385, %v384
      %v393 = vsel %vm276, %v370, 0
      %v396 = vsel %vm276, %v371, 0
      %v399 = vsel %vm276, %v372, 0
      %v402 = vsel %vm276, %v373, 0
      %404 = vmatprep.subr.bf16.mxu0 0
      %405 = vmatpush1.bf16.msra.mxu0 %v386
      %406 = vmatprep.subr.bf16.mxu0 0
      %407 = vmatpush1.bf16.msra.mxu0 %v387
      %408 = vmatprep.subr.bf16.mxu0 0
      %409 = vmatpush1.bf16.msra.mxu0 %v388
      %410 = vmatprep.subr.bf16.mxu0 0
      %411 = vmatpush1.bf16.msra.mxu0 0
      %412 = vmatprep.subr.bf16.mxu0 0
      %413 = vmatpush1.bf16.msra.mxu0 0
      %414 = vmatprep.subr.bf16.mxu0 0
      %415 = vmatpush1.bf16.msra.mxu0 0
      %416 = vmatprep.subr.bf16.mxu0 0
      %417 = vmatpush1.bf16.msra.mxu0 0
      %418 = vmatprep.subr.bf16.mxu0 0
      %419 = vmatpush1.bf16.msra.mxu0 0
      %420 = vmatprep.subr.bf16.mxu0 0
      %421 = vmatpush1.bf16.msra.mxu0 0
      %422 = vmatprep.subr.bf16.mxu0 0
      %423 = vmatpush1.bf16.msra.mxu0 0
      %424 = vmatprep.subr.bf16.mxu0 0
      %425 = vmatpush1.bf16.msra.mxu0 0
      %426 = vmatprep.subr.bf16.mxu0 0
      %427 = vmatpush1.bf16.msra.mxu0 0
      %428 = vmatprep.subr.bf16.mxu0 0
      %429 = vmatpush1.bf16.msra.mxu0 0
      %430 = vmatprep.subr.bf16.mxu0 0
      %431 = vmatpush1.bf16.msra.mxu0 0
      %432 = vmatprep.subr.bf16.mxu0 0
      %433 = vmatpush1.bf16.msra.mxu0 0
      %434 = vmatprep.subr.bf16.mxu0 0
      %435 = vmatpush1.bf16.msra.mxu0 0
      %436 = vmatprep.mubr.bf16.mxu0 0
      %437 = vmatmul.mubr.bf16.gmra.mrb[0].mxu0 %v393
      %v438 = vpop.f32.mrb[0].mxu0
      %v439 = vadd.f32 %v324, %v438
      %v440 = vpop.f32.mrb[0].mxu0
      %v441 = vpop.f32.mrb[0].mxu0
      %v442 = vadd.f32 %v327, %v441
      %v443 = vpop.f32.mrb[0].mxu0
      %444 = vmatprep.mubr.bf16.mxu0 0
      %445 = vmatmul.mubr.bf16.gmra.mrb[0].mxu0 %v396
      %v446 = vpop.f32.mrb[0].mxu0
      %v447 = vadd.f32 %v332, %v446
      %v448 = vpop.f32.mrb[0].mxu0
      %v449 = vpop.f32.mrb[0].mxu0
      %v450 = vadd.f32 %v335, %v449
      %v451 = vpop.f32.mrb[0].mxu0
      %452 = vmatprep.mubr.bf16.mxu0 0
      %453 = vmatmul.mubr.bf16.gmra.mrb[0].mxu0 %v399
      %v454 = vpop.f32.mrb[0].mxu0
      %v455 = vadd.f32 %v340, %v454
      %v456 = vpop.f32.mrb[0].mxu0
      %v457 = vpop.f32.mrb[0].mxu0
      %v458 = vadd.f32 %v343, %v457
      %v459 = vpop.f32.mrb[0].mxu0
      %460 = vmatprep.mubr.bf16.mxu0 0
      %461 = vmatmul.mubr.bf16.gmra.mrb[0].mxu0 %v402
      %v462 = vpop.f32.mrb[0].mxu0
      %v463 = vadd.f32 %v348, %v462
      %v464 = vpop.f32.mrb[0].mxu0
      %v465 = vpop.f32.mrb[0].mxu0
      %v466 = vadd.f32 %v351, %v465
      %v467 = vpop.f32.mrb[0].mxu0
      %468 = vdwg.mxu0
      %s469 = scalar_lea.vmem %s197, 8
      %v470 = vld [vmem:[%s469] sm:$0xf]
      %v471 = vld [vmem:[%s469 + $0x4] sm:$0xf]
      %v472 = vld [vmem:[%s469 + $0x8] sm:$0xf]
      %v473 = vld [vmem:[%s469 + $0xc] sm:$0xf]
      %v474 = vld [vmem:[%s469 + $0x10] sm:$0xf]
      %v475 = vld [vmem:[%s469 + $0x14] sm:$0xf]
      %v476 = vld [vmem:[%s469 + $0x18] sm:$0xf]
      %v477 = vld [vmem:[%s469 + $0x1c] sm:$0xf]
      %s478 = scalar_lea.vmem %s1, 48
      %v479 = vld [vmem:[%s478] sm:$0xf]
      %v480 = vld [vmem:[%s478 + $0x4] sm:$0xf]
      %v481 = vld [vmem:[%s478 + $0x8] sm:$0xf]
      %v482 = vld [vmem:[%s478 + $0xc] sm:$0xf]
      %v483 = vld [vmem:[%s478 + $0x10] sm:$0xf]
      %v484 = vld [vmem:[%s478 + $0x14] sm:$0xf]
      %v493 = vunpack.c.l.b16 %v470
      %v494 = vunpack.c.l.b16 %v471
      %v495 = vunpack.c.l.b16 %v472
      %v496 = vunpack.c.l.b16 %v473
      %v497 = vunpack.c.l.b16 %v474
      %v498 = vunpack.c.l.b16 %v475
      %v499 = vunpack.c.l.b16 %v476
      %v500 = vunpack.c.l.b16 %v477
      %v501 = vpack.c.b16 %v494, %v493
      %v502 = vpack.c.b16 %v496, %v495
      %v503 = vpack.c.b16 %v498, %v497
      %v504 = vpack.c.b16 %v500, %v499
      %v511 = vunpack.c.l.b16 %v479
      %v512 = vunpack.c.l.b16 %v480
      %v513 = vunpack.c.l.b16 %v481
      %v514 = vunpack.c.l.b16 %v482
      %v515 = vunpack.c.l.b16 %v483
      %v516 = vunpack.c.l.b16 %v484
      %v517 = vpack.c.b16 %v512, %v511
      %v518 = vpack.c.b16 %v514, %v513
      %v519 = vpack.c.b16 %v516, %v515
      %v524 = vsel %vm276, %v501, 0
      %v527 = vsel %vm276, %v502, 0
      %v530 = vsel %vm276, %v503, 0
      %v533 = vsel %vm276, %v504, 0
      %535 = vmatprep.subr.bf16.mxu0 0
      %536 = vmatpush1.bf16.msra.mxu0 %v517
      %537 = vmatprep.subr.bf16.mxu0 0
      %538 = vmatpush1.bf16.msra.mxu0 %v518
      %539 = vmatprep.subr.bf16.mxu0 0
      %540 = vmatpush1.bf16.msra.mxu0 %v519
      %541 = vmatprep.subr.bf16.mxu0 0
      %542 = vmatpush1.bf16.msra.mxu0 0
      %543 = vmatprep.subr.bf16.mxu0 0
      %544 = vmatpush1.bf16.msra.mxu0 0
      %545 = vmatprep.subr.bf16.mxu0 0
      %546 = vmatpush1.bf16.msra.mxu0 0
      %547 = vmatprep.subr.bf16.mxu0 0
      %548 = vmatpush1.bf16.msra.mxu0 0
      %549 = vmatprep.subr.bf16.mxu0 0
      %550 = vmatpush1.bf16.msra.mxu0 0
      %551 = vmatprep.subr.bf16.mxu0 0
      %552 = vmatpush1.bf16.msra.mxu0 0
      %553 = vmatprep.subr.bf16.mxu0 0
      %554 = vmatpush1.bf16.msra.mxu0 0
      %555 = vmatprep.subr.bf16.mxu0 0
      %556 = vmatpush1.bf16.msra.mxu0 0
      %557 = vmatprep.subr.bf16.mxu0 0
      %558 = vmatpush1.bf16.msra.mxu0 0
      %559 = vmatprep.subr.bf16.mxu0 0
      %560 = vmatpush1.bf16.msra.mxu0 0
      %561 = vmatprep.subr.bf16.mxu0 0
      %562 = vmatpush1.bf16.msra.mxu0 0
      %563 = vmatprep.subr.bf16.mxu0 0
      %564 = vmatpush1.bf16.msra.mxu0 0
      %565 = vmatprep.subr.bf16.mxu0 0
      %566 = vmatpush1.bf16.msra.mxu0 0
      %567 = vmatprep.mubr.bf16.mxu0 0
      %568 = vmatmul.mubr.bf16.gmra.mrb[0].mxu0 %v524
      %v569 = vpop.f32.mrb[0].mxu0
      %v570 = vadd.f32 0.0, %v569
      %v571 = vpop.f32.mrb[0].mxu0
      %v572 = vpop.f32.mrb[0].mxu0
      %v573 = vadd.f32 0.0, %v572
      %v574 = vpop.f32.mrb[0].mxu0
      %575 = vmatprep.mubr.bf16.mxu0 0
      %576 = vmatmul.mubr.bf16.gmra.mrb[0].mxu0 %v527
      %v577 = vpop.f32.mrb[0].mxu0
      %v578 = vadd.f32 0.0, %v577
      %v579 = vpop.f32.mrb[0].mxu0
      %v580 = vpop.f32.mrb[0].mxu0
      %v581 = vadd.f32 0.0, %v580
      %v582 = vpop.f32.mrb[0].mxu0
      %583 = vmatprep.mubr.bf16.mxu0 0
      %584 = vmatmul.mubr.bf16.gmra.mrb[0].mxu0 %v530
      %v585 = vpop.f32.mrb[0].mxu0
      %v586 = vadd.f32 0.0, %v585
      %v587 = vpop.f32.mrb[0].mxu0
      %v588 = vpop.f32.mrb[0].mxu0
      %v589 = vadd.f32 0.0, %v588
      %v590 = vpop.f32.mrb[0].mxu0
      %591 = vmatprep.mubr.bf16.mxu0 0
      %592 = vmatmul.mubr.bf16.gmra.mrb[0].mxu0 %v533
      %v593 = vpop.f32.mrb[0].mxu0
      %v594 = vadd.f32 0.0, %v593
      %v595 = vpop.f32.mrb[0].mxu0
      %v596 = vpop.f32.mrb[0].mxu0
      %v597 = vadd.f32 0.0, %v596
      %v598 = vpop.f32.mrb[0].mxu0
      %599 = vdwg.mxu0
      %v600 = vadd.f32 %v439, %v570
      %v601 = vadd.f32 %v442, %v573
      %v602 = vadd.f32 %v447, %v578
      %v603 = vadd.f32 %v450, %v581
      %v604 = vadd.f32 %v455, %v586
      %v605 = vadd.f32 %v458, %v589
      %v606 = vadd.f32 %v463, %v594
      %v607 = vadd.f32 %v466, %v597
      %v608 = vld [vmem:[%s2] sm:$0x1]
      %v610 = vlaneseq
      %v611 = vshrl.u32 %v610, 7
      %v612 = vsub.s32 0, %v611
      %v613 = vrot.slane %v608, %v612
      %v615 = vadd.f32 %v600, %v613
      %v616 = vadd.f32 %v601, %v613
      %v617 = vadd.f32 %v602, %v613
      %v618 = vadd.f32 %v603, %v613
      %v619 = vadd.f32 %v604, %v613
      %v620 = vadd.f32 %v605, %v613
      %v621 = vadd.f32 %v606, %v613
      %v622 = vadd.f32 %v607, %v613
      %v623 = vmax.f32 %v615, 0.0
      %v624 = vmax.f32 %v616, 0.0
      %v625 = vmax.f32 %v617, 0.0
      %v626 = vmax.f32 %v618, 0.0
      %v627 = vmax.f32 %v619, 0.0
      %v628 = vmax.f32 %v620, 0.0
      %v629 = vmax.f32 %v621, 0.0
      %v630 = vmax.f32 %v622, 0.0
      %vm631 = vcmask 261120
      %632 = vst.msk [vmem:[%s206] sm:$0xff] %vm631, %v623
      %633 = vst.msk [vmem:[%s206 + $0x8] sm:$0xff] %vm631, %v624
      %634 = vst.msk [vmem:[%s206 + $0x10] sm:$0xff] %vm631, %v625
      %635 = vst.msk [vmem:[%s206 + $0x18] sm:$0xff] %vm631, %v626
      %636 = vst.msk [vmem:[%s206 + $0x20] sm:$0xff] %vm631, %v627
      %637 = vst.msk [vmem:[%s206 + $0x28] sm:$0xff] %vm631, %v628
      %638 = vst.msk [vmem:[%s206 + $0x30] sm:$0xff] %vm631, %v629
      %639 = vst.msk [vmem:[%s206 + $0x38] sm:$0xff] %vm631, %v630
      %p640 = scmp.lt.s32.totalorder %s18, 1
      %s641 = scalar_select %p640, %s18, 1
      %p642 = scmp.lt.s32.totalorder %s19, 0
      %s643 = scalar_select %p642, %s19, 0
      %s644 = smul.addr %s643, 8
      %s645 = smul.addr %s641, 8
      %s646 = sadd.s32 %s644, %s645
      %s647 = smul.addr %s646, 8
      %s648 = scalar_lea.vmem %s3, %s647
      // Predicated region
      $region33: #{tpu_custom_call.1} parent=31 // pred_check
        %p649 = pneg %p116
      $region34: #{tpu_custom_call.1} parent=31 // pred_check_branch
        %651 = sbr.rel (%p649) target = $region36
      $region35: #{tpu_custom_call.1} parent=31 // pred_region
        _
      $region36: #{tpu_custom_call.1} parent=31 // pred_fallthru
        _
    $region32: #{tpu_custom_call.1} parent=5 // pred_fallthru
      _
    %p652 = scmp.le.s32.totalorder 2, %s9
    // Predicated region
    $region37: #{tpu_custom_call.1} parent=5 // pred_check
      %p653 = pneg %p652
    $region38: #{tpu_custom_call.1} parent=5 // pred_check_branch
      %655 = sbr.rel (%p653) target = $region40
    $region39: #{tpu_custom_call.1} parent=5 // pred_region
      %s656 = ssub.s32 %s9, 2
      // Predicated region
      $region41: #{tpu_custom_call.1} parent=39 // pred_check
        %p657 = pneg %p122
      $region42: #{tpu_custom_call.1} parent=39 // pred_check_branch
        %659 = sbr.rel (%p657) target = $region44
      $region43: #{tpu_custom_call.1} parent=39 // pred_region
        %p660 = scmp.lt.s32.totalorder %s20, 1
        %s661 = scalar_select %p660, %s20, 1
        %p662 = scmp.lt.s32.totalorder %s21, 0
        %s663 = scalar_select %p662, %s21, 0
        %s664 = smul.addr %s663, 8
        %s665 = smul.addr %s661, 8
        %s666 = sadd.s32 %s664, %s665
        %s667 = smul.addr %s666, 8
        %s668 = scalar_lea.vmem %s3, %s667
      $region44: #{tpu_custom_call.1} parent=39 // pred_fallthru
        _
    $region40: #{tpu_custom_call.1} parent=5 // pred_fallthru
      _
  $region6: #{tpu_custom_call.1} parent=0 // loop_footer
    %s13 = sadd.s32 1, %s9
  $region7: #{tpu_custom_call.1} parent=0 // loop_footer_branch
    %8 = sbr.rel target = $region3
  $region8: #{tpu_custom_call.1} parent=0 // loop_exit
    _

</llo_original>
